<compile_context>
chip_gen: v6e
topology: v6e:2x2x1
jax: 0.10.0
libtpu: 0.0.40
codegen_flags: <defaults>
</compile_context>

<pallas_src>
import jax
import jax.numpy as jnp
from jax.experimental import pallas as pl
from jax.experimental.pallas import tpu as pltpu


def _round_up(x, m):
    return (x + m - 1) // m * m


def _vmem_budget_bytes():
    """Conservative per-kernel VMEM working-set budget for the current TPU."""
    kind = ""
    try:
        kind = jax.devices()[0].device_kind.lower()
    except Exception:
        pass
    if "v5 lite" in kind or "v5e" in kind or "v6" in kind:
        return 80 * 1024 * 1024       # 128 MiB physical VMEM per core
    return 40 * 1024 * 1024           # unknown / v7x (64 MiB per core): be safe


def _pad_dim(d):
    """Pad a fused (4*features) dim to a lane / MXU friendly size."""
    d = _round_up(d, 128)
    if d > 1024:
        d = _round_up(d, 256)         # keep 256/512/768/1024-wide tiles possible
    return d


def _pick_divisor_tile(total, max_tile=1024):
    """Largest 128-multiple tile <= max_tile that divides `total`."""
    if total <= max_tile:
        return total
    for t in range(max_tile, 127, -128):
        if total % t == 0:
            return t
    return 128


def _choose_tm(m, cap_rows):
    """Pick the M tile: single tile for small M, else minimise padding waste."""
    cap = int(min(1024, cap_rows))
    cap = max(16, (cap // 16) * 16)
    if m <= cap:
        return _round_up(m, 16)
    cands = [c for c in (1024, 896, 768, 640, 512, 384, 256, 128) if c <= cap]
    if not cands:
        return cap
    return min(cands, key=lambda t: (_round_up(m, t) - m, -t))


# Hamilton-product structure:  output component c_out receives
#   sum_{c_in}  sign[c_in, c_out] * x[c_in] @ W_{comp[c_in, c_out]}.T
_HAMILTON_COMP = ((0, 1, 2, 3),
                  (1, 0, 3, 2),
                  (2, 3, 0, 1),
                  (3, 2, 1, 0))
_HAMILTON_SIGN = ((1, 1, 1, 1),
                  (-1, 1, -1, 1),
                  (-1, 1, 1, -1),
                  (-1, -1, 1, 1))


def pack_quaternion_weights(r_w, i_w, j_w, k_w, bias=None, *,
                            compute_dtype=jnp.bfloat16):
    """One-time packing of the four component weights (and bias) into the
    fused interleaved layout consumed by the kernel.  Hoist this out of the
    per-call hot path and reuse the result.

    Returns (w_big [K, N] compute_dtype, bias_row [1, N] float32) with
      row index    = in_feature  * 4 + input_component  (r, i, j, k)
      column index = out_feature * 4 + output_component (r, i, j, k)
    """
    out_f, in_f = r_w.shape
    K = _pad_dim(4 * in_f)
    N = _pad_dim(4 * out_f)

    w4 = jnp.stack([r_w, i_w, j_w, k_w], axis=0).astype(compute_dtype)
    comp = jnp.array(_HAMILTON_COMP, dtype=jnp.int32)
    sign = jnp.array(_HAMILTON_SIGN, dtype=compute_dtype)
    # blocks[c_in, c_out] = sign * W_component, each of shape [out_f, in_f].
    blocks = w4[comp] * sign[:, :, None, None]          # [4, 4, out_f, in_f]
    # -> [in_f, c_in, out_f, c_out] -> interleaved [4*in_f, 4*out_f].
    w_big = blocks.transpose(3, 0, 2, 1).reshape(4 * in_f, 4 * out_f)
    w_big = jnp.pad(w_big, ((0, K - 4 * in_f), (0, N - 4 * out_f)))

    if bias is None:
        b_row = jnp.zeros((1, N), jnp.float32)
    else:
        b_row = jnp.pad(bias.astype(jnp.float32).reshape(1, 4 * out_f),
                        ((0, 0), (0, N - 4 * out_f)))
    return w_big, b_row


def _quat_matmul_kernel(x_ref, w_ref, b_ref, o_ref, acc_ref):
    k = pl.program_id(2)
    prod = jnp.dot(x_ref[...], w_ref[...], preferred_element_type=jnp.float32)

    @pl.when(k == 0)
    def _seed():                      # first K step: no separate zero-init pass
        acc_ref[...] = prod

    @pl.when(k > 0)
    def _accumulate():
        acc_ref[...] += prod

    @pl.when(k == pl.num_programs(2) - 1)
    def _finalize():                  # bias folded into the final store
        o_ref[...] = (acc_ref[...] + b_ref[...]).astype(o_ref.dtype)


def quaternion_linear_packed(x, w_big, b_row, out_features, *,
                             compute_dtype=jnp.bfloat16):
    """Forward pass with pre-packed weights.

    x:       [B, S, in_features, 4]   (last axis = r, i, j, k)
    w_big:   [K, N] from pack_quaternion_weights
    b_row:   [1, N] float32
    returns: [B, S, out_features, 4] in x.dtype
    """
    B, S, in_f, q = x.shape
    assert q == 4
    M = B * S
    K, N = w_big.shape
    assert K % 128 == 0 and N % 128 == 0
    assert 4 * in_f <= K and 4 * out_features <= N
    out_dtype = x.dtype
    cdt_bytes = jnp.dtype(compute_dtype).itemsize
    out_bytes = jnp.dtype(out_dtype).itemsize

    budget = _vmem_budget_bytes()

    # ---- Tile plan. --------------------------------------------------------
    # Resident-W fast path: the fused weight (double-buffered) comfortably fits
    # in VMEM -> keep W on-chip, grid only over M, no K-axis revisits.
    resident = (K * N * cdt_bytes) <= budget // 4
    if resident:
        tk, tn = K, N
    else:
        tk = _pick_divisor_tile(K, 1024)
        tn = _pick_divisor_tile(N, 1024)

    fixed = 2 * tk * tn * cdt_bytes + 2 * tn * 4          # W + bias (dbl-buf)
    per_row = 2 * tk * cdt_bytes + 2 * tn * out_bytes + tn * 4
    cap_rows = max(16, (budget - fixed) // per_row)
    tm = _choose_tm(M, cap_rows)
    m_pad = _round_up(M, tm)

    grid = (m_pad // tm, N // tn, K // tk)

    # ---- Pack activations: free reshape (interleaved layout), then pad. -----
    x2 = x.astype(compute_dtype).reshape(M, 4 * in_f)
    x2 = jnp.pad(x2, ((0, m_pad - M), (0, K - 4 * in_f)))

    flops = 2 * m_pad * N * K
    bytes_accessed = (m_pad * K * cdt_bytes + K * N * cdt_bytes
                      + m_pad * N * out_bytes + N * 4)

    y = pl.pallas_call(
        _quat_matmul_kernel,
        out_shape=jax.ShapeDtypeStruct((m_pad, N), out_dtype),
        grid=grid,
        in_specs=[
            pl.BlockSpec((tm, tk), lambda m, n, k: (m, k)),    # activations
            pl.BlockSpec((tk, tn), lambda m, n, k: (k, n)),    # fused weights
            pl.BlockSpec((1, tn), lambda m, n, k: (0, n)),     # bias row
        ],
        out_specs=pl.BlockSpec((tm, tn), lambda m, n, k: (m, n)),
        scratch_shapes=[pltpu.VMEM((tm, tn), jnp.float32)],
        compiler_params=pltpu.CompilerParams(
            dimension_semantics=("parallel", "parallel", "arbitrary"),
            vmem_limit_bytes=budget + 8 * 1024 * 1024,
        ),
        cost_estimate=pl.CostEstimate(
            flops=flops, transcendentals=0, bytes_accessed=bytes_accessed),
    )(x2, w_big, b_row)

    # ---- Unpack: pure slice + reshape (no transpose). -----------------------
    return y[:M, :4 * out_features].reshape(B, S, out_features, 4)


def quaternion_linear(x, r_w, i_w, j_w, k_w, bias=None, *,
                      compute_dtype=jnp.bfloat16):
    """Convenience wrapper: packs weights then runs the fused kernel.
    For repeated calls, pack once with pack_quaternion_weights and call
    quaternion_linear_packed directly (weight packing is a one-time cost)."""
    w_big, b_row = pack_quaternion_weights(
        r_w, i_w, j_w, k_w, bias, compute_dtype=compute_dtype)
    return quaternion_linear_packed(
        x, w_big, b_row, r_w.shape[0], compute_dtype=compute_dtype)


if __name__ == "__main__":
    B, S, in_features, out_features = 2, 8, 32, 32

    key = jax.random.PRNGKey(0)
    kx, kr, ki, kj, kk = jax.random.split(key, 5)

    def xavier_uniform(rng, out_f, in_f):
        bound = (6.0 / (in_f + out_f)) ** 0.5
        return jax.random.uniform(rng, (out_f, in_f), jnp.float32, -bound, bound)

    x = jax.random.normal(kx, (B, S, in_features, 4), jnp.float32)
    r_w = xavier_uniform(kr, out_features, in_features)
    i_w = xavier_uniform(ki, out_features, in_features)
    j_w = xavier_uniform(kj, out_features, in_features)
    k_w = xavier_uniform(kk, out_features, in_features)
    bias = jnp.zeros((out_features, 4), jnp.float32)

    # One-time packing (hoisted out of the hot path), then the fused kernel.
    w_big, b_row = pack_quaternion_weights(r_w, i_w, j_w, k_w, bias)
    out = quaternion_linear_packed(x, w_big, b_row, out_features)
    out = jax.block_until_ready(out)

    # Pure-JAX reference (operands cast to bf16 to mirror the kernel's MXU
    # precision; accumulation in f32).
    f32 = lambda a: a.astype(jnp.bfloat16).astype(jnp.float32)
    xr = f32(x)
    r, i, j, k = xr[..., 0], xr[..., 1], xr[..., 2], xr[..., 3]
    lin = lambda a, w: jnp.dot(a, f32(w).T, preferred_element_type=jnp.float32)
    r_ref = lin(r, r_w) - lin(i, i_w) - lin(j, j_w) - lin(k, k_w)
    i_ref = lin(r, i_w) + lin(i, r_w) + lin(j, k_w) - lin(k, j_w)
    j_ref = lin(r, j_w) - lin(i, k_w) + lin(j, r_w) + lin(k, i_w)
    k_ref = lin(r, k_w) + lin(i, j_w) - lin(j, i_w) + lin(k, r_w)
    ref = jnp.stack([r_ref, i_ref, j_ref, k_ref], axis=-1) + bias[None, None]

    assert out.shape == (B, S, out_features, 4)
    err = float(jnp.max(jnp.abs(out - ref)))
    assert jnp.allclose(out, ref, atol=2e-2, rtol=2e-2), err
    print("KERNEL_OK")
</pallas_src>

<mosaic_0001>
module attributes {stable_mosaic.version = 11 : i64} {
  func.func @_quat_matmul_kernel(%arg0: i32, %arg1: i32, %arg2: i32, %arg3: memref<16x128xbf16, #tpu.memory_space<vmem>>, %arg4: memref<128x128xbf16, #tpu.memory_space<vmem>>, %arg5: memref<1x128xf32, #tpu.memory_space<vmem>>, %arg6: memref<16x128xf32, #tpu.memory_space<vmem>>, %arg7: memref<16x128xf32, #tpu.memory_space<vmem>>) attributes {dimension_semantics = [#tpu.dimension_semantics<parallel>, #tpu.dimension_semantics<parallel>, #tpu.dimension_semantics<arbitrary>], iteration_bounds = array<i64: 1, 1, 1>, scalar_prefetch = 0 : i64, scratch_operands = 1 : i64, tpu.core_type = #tpu.core_type<tc>, window_params = [{transform_indices = @transform_0, window_bounds = array<i64: 16, 128>}, {transform_indices = @transform_1, window_bounds = array<i64: 128, 128>}, {transform_indices = @transform_2, window_bounds = array<i64: 1, 128>}, {transform_indices = @transform_3, window_bounds = array<i64: 16, 128>}]} {
    %c0 = arith.constant 0 : index
    %c0_0 = arith.constant 0 : index
    %0 = vector.load %arg3[%c0, %c0_0] : memref<16x128xbf16, #tpu.memory_space<vmem>>, vector<16x128xbf16>
    %c0_1 = arith.constant 0 : index
    %c0_2 = arith.constant 0 : index
    %1 = vector.load %arg4[%c0_1, %c0_2] : memref<128x128xbf16, #tpu.memory_space<vmem>>, vector<128x128xbf16>
    %cst = arith.constant dense<0.000000e+00> : vector<16x128xf32>
    %2 = tpu.matmul %0, %1, %cst {dimension_numbers = #tpu.dot_dimension_numbers<[1], [0], [0], [1], [0, 0, 1, 1], [], []>} : vector<16x128xbf16>, vector<128x128xbf16>, vector<16x128xf32> -> vector<16x128xf32>
    %c0_i32 = arith.constant 0 : i32
    %3 = arith.cmpi eq, %arg2, %c0_i32 : i32
    %4 = arith.extui %3 : i1 to i32
    %c0_i32_3 = arith.constant 0 : i32
    %5 = arith.cmpi ne, %4, %c0_i32_3 : i32
    scf.if %5 {
      %c0_8 = arith.constant 0 : index
      %c0_9 = arith.constant 0 : index
      %12 = vector.load %arg7[%c0_8, %c0_9] : memref<16x128xf32, #tpu.memory_space<vmem>>, vector<16x128xf32>
      tpu.vector_store %arg7[%c0_8, %c0_9], %2 {strides = array<i32>} : memref<16x128xf32, #tpu.memory_space<vmem>>, vector<16x128xf32>,
    } else {
    }
    %c0_i32_4 = arith.constant 0 : i32
    %6 = arith.cmpi sgt, %arg2, %c0_i32_4 : i32
    %7 = arith.extui %6 : i1 to i32
    %c0_i32_5 = arith.constant 0 : i32
    %8 = arith.cmpi ne, %7, %c0_i32_5 : i32
    scf.if %8 {
      %c0_8 = arith.constant 0 : index
      %c0_9 = arith.constant 0 : index
      %12 = vector.load %arg7[%c0_8, %c0_9] : memref<16x128xf32, #tpu.memory_space<vmem>>, vector<16x128xf32>
      %13 = arith.addf %12, %2 : vector<16x128xf32>
      %c0_10 = arith.constant 0 : index
      %c0_11 = arith.constant 0 : index
      %14 = vector.load %arg7[%c0_10, %c0_11] : memref<16x128xf32, #tpu.memory_space<vmem>>, vector<16x128xf32>
      tpu.vector_store %arg7[%c0_10, %c0_11], %13 {strides = array<i32>} : memref<16x128xf32, #tpu.memory_space<vmem>>, vector<16x128xf32>,
    } else {
    }
    %c0_i32_6 = arith.constant 0 : i32
    %9 = arith.cmpi eq, %arg2, %c0_i32_6 : i32
    %10 = arith.extui %9 : i1 to i32
    %c0_i32_7 = arith.constant 0 : i32
    %11 = arith.cmpi ne, %10, %c0_i32_7 : i32
    scf.if %11 {
      %c0_8 = arith.constant 0 : index
      %c0_9 = arith.constant 0 : index
      %12 = vector.load %arg7[%c0_8, %c0_9] : memref<16x128xf32, #tpu.memory_space<vmem>>, vector<16x128xf32>
      %c0_10 = arith.constant 0 : index
      %c0_11 = arith.constant 0 : index
      %13 = vector.load %arg5[%c0_10, %c0_11] : memref<1x128xf32, #tpu.memory_space<vmem>>, vector<1x128xf32>
      %14 = vector.broadcast %13 : vector<1x128xf32> to vector<16x128xf32>
      %15 = arith.addf %12, %14 : vector<16x128xf32>
      %c0_12 = arith.constant 0 : index
      %c0_13 = arith.constant 0 : index
      %16 = vector.load %arg6[%c0_12, %c0_13] : memref<16x128xf32, #tpu.memory_space<vmem>>, vector<16x128xf32>
      tpu.vector_store %arg6[%c0_12, %c0_13], %15 {strides = array<i32>} : memref<16x128xf32, #tpu.memory_space<vmem>>, vector<16x128xf32>,
    } else {
    }
    return
  }
  func.func @transform_0(%arg0: i32, %arg1: i32, %arg2: i32) -> (i32, i32) {
    %c0_i32 = arith.constant 0 : i32
    return %arg0, %arg2 : i32, i32
  }
  func.func @transform_1(%arg0: i32, %arg1: i32, %arg2: i32) -> (i32, i32) {
    %c0_i32 = arith.constant 0 : i32
    return %arg2, %arg1 : i32, i32
  }
  func.func @transform_2(%arg0: i32, %arg1: i32, %arg2: i32) -> (i32, i32) {
    %c0_i32 = arith.constant 0 : i32
    %c0_i32_0 = arith.constant 0 : i32
    return %c0_i32, %arg1 : i32, i32
  }
  func.func @transform_3(%arg0: i32, %arg1: i32, %arg2: i32) -> (i32, i32) {
    %c0_i32 = arith.constant 0 : i32
    return %arg0, %arg1 : i32, i32
  }
}

</mosaic_0001>

<llo_original>
// kernel: tpu_custom_call.1
$region0: #{tpu_custom_call.1}
  #allocation0 [shape = 'u32[]', space=smem, size = 0x4, offset = 0x4, fixed_abs, tag = 'smem constant byte address 0x4 - core index']
  #allocation1 [shape = 'u32[144,128]{1,0:T(1,128)}', space=vmem, size = 0x12000, scoped, tag = 'internal scratch']
  #allocation2 [shape = 'f32[16,128]{1,0:T(8,128)}', space=vmem, size = 0x2000, scoped, tag = 'scratch operand']
  %s0 = inlined_call_operand.hbm [shape: bf16[16,128], index: 0, kind: input, shape index: {}]
  %s1 = inlined_call_operand.hbm [shape: bf16[128,128], index: 1, kind: input, shape index: {}]
  %s2 = inlined_call_operand.vmem [shape: f32[1,128], index: 2, kind: input, shape index: {}]
  %s3 = inlined_call_operand.hbm [shape: f32[16,128], index: 3, kind: output, shape index: {}]
  %s4 = sld [smem:[#allocation0]]
  $region42: #{tpu_custom_call.1} parent=0
    _
  %s6 = ssub.s32 1, %s4
  %s7 = scalar_select 0, %s6, %s4
  $region1: #{tpu_custom_call.1} parent=0
    #allocation3 [shape = 'u8[4096]{0}', space=vmem, size = 0x1000, scoped, tag = 'input window, operand 0, single buffered']
    #allocation4 [shape = 's32[1]{0}', space=sflag, size = 0x4, scoped, tag = 'scoped memory for tpu_custom_call.1']
    #allocation5 [shape = 's32[1]{0}', space=sflag, size = 0x4, scoped, tag = 'scoped memory for tpu_custom_call.1']
    #allocation6 [shape = 'u8[32768]{0}', space=vmem, size = 0x8000, scoped, tag = 'input window, operand 1, single buffered']
    #allocation7 [shape = 's32[1]{0}', space=sflag, size = 0x4, scoped, tag = 'scoped memory for tpu_custom_call.1']
    #allocation8 [shape = 'u8[8192]{0}', space=vmem, size = 0x2000, scoped, tag = 'output window, operand 0, single buffered']
    %8 = vsyncpa [#allocation4], 0
    %9 = vsyncpa [#allocation7], 0
    %10 = vsyncpa [#allocation5], 0
    // Predicated region
    $region2: #{tpu_custom_call.1} parent=1 // pred_check
      _
    $region3: #{tpu_custom_call.1} parent=1 // pred_check_branch
      %12 = sbr.rel (0) target = $region5
    $region4: #{tpu_custom_call.1} parent=1 // pred_region
      %s14 = ssub.s32 128, 128
      %15 = vsyncadd [#allocation4], %s14
      %s16 = sshll.u32 [#allocation3], 4
      %s17 = int_to_ptr.vmem [resolvable:$true] %s16
      %22 = dma.hbm_to_vmem [thread:$0]  %s0, 128, %s17, [#allocation4], 64, 64, 4
    $region5: #{tpu_custom_call.1} parent=1 // pred_fallthru
      _
    // Predicated region
    $region6: #{tpu_custom_call.1} parent=1 // pred_check
      _
    $region7: #{tpu_custom_call.1} parent=1 // pred_check_branch
      %24 = sbr.rel (0) target = $region9
    $region8: #{tpu_custom_call.1} parent=1 // pred_region
      %s26 = ssub.s32 1024, 1024
      %27 = vsyncadd [#allocation7], %s26
      %s28 = sshll.u32 [#allocation6], 4
      %s29 = int_to_ptr.vmem [resolvable:$true] %s28
      %34 = dma.hbm_to_vmem [thread:$0]  %s1, 1024, %s29, [#allocation7], 64, 64, 4
    $region9: #{tpu_custom_call.1} parent=1 // pred_fallthru
      _
    // Predicated region
    $region10: #{tpu_custom_call.1} parent=1 // pred_check
      _
    $region11: #{tpu_custom_call.1} parent=1 // pred_check_branch
      %36 = sbr.rel (0) target = $region13
    $region12: #{tpu_custom_call.1} parent=1 // pred_region
      _
    $region13: #{tpu_custom_call.1} parent=1 // pred_fallthru
      _
    // Predicated region
    $region14: #{tpu_custom_call.1} parent=1 // pred_check
      _
    $region15: #{tpu_custom_call.1} parent=1 // pred_check_branch
      %38 = sbr.rel (0) target = $region17
    $region16: #{tpu_custom_call.1} parent=1 // pred_region
      %39 = dma.done [#allocation4], 128
    $region17: #{tpu_custom_call.1} parent=1 // pred_fallthru
      _
    // Predicated region
    $region18: #{tpu_custom_call.1} parent=1 // pred_check
      _
    $region19: #{tpu_custom_call.1} parent=1 // pred_check_branch
      %41 = sbr.rel (0) target = $region21
    $region20: #{tpu_custom_call.1} parent=1 // pred_region
      %42 = dma.done [#allocation7], 1024
    $region21: #{tpu_custom_call.1} parent=1 // pred_fallthru
      _
    %v44 = vld [vmem:[#allocation3] sm:$0xf]
    %v45 = vld [vmem:[#allocation3 + $0x4] sm:$0xf]
    %v46 = vld [vmem:[#allocation6] sm:$0xf]
    %v47 = vld [vmem:[#allocation6 + $0x4] sm:$0xf]
    %v48 = vld [vmem:[#allocation6 + $0x8] sm:$0xf]
    %v49 = vld [vmem:[#allocation6 + $0xc] sm:$0xf]
    %v50 = vld [vmem:[#allocation6 + $0x10] sm:$0xf]
    %v51 = vld [vmem:[#allocation6 + $0x14] sm:$0xf]
    %v52 = vld [vmem:[#allocation6 + $0x18] sm:$0xf]
    %v53 = vld [vmem:[#allocation6 + $0x1c] sm:$0xf]
    %v54 = vld [vmem:[#allocation6 + $0x20] sm:$0xf]
    %v55 = vld [vmem:[#allocation6 + $0x24] sm:$0xf]
    %v56 = vld [vmem:[#allocation6 + $0x28] sm:$0xf]
    %v57 = vld [vmem:[#allocation6 + $0x2c] sm:$0xf]
    %v58 = vld [vmem:[#allocation6 + $0x30] sm:$0xf]
    %v59 = vld [vmem:[#allocation6 + $0x34] sm:$0xf]
    %v60 = vld [vmem:[#allocation6 + $0x38] sm:$0xf]
    %v61 = vld [vmem:[#allocation6 + $0x3c] sm:$0xf]
    %v64 = vunpack.c.l.b16 %v44
    %v65 = vunpack.c.l.b16 %v45
    %v66 = vpack.c.b16 %v65, %v64
    %v84 = vunpack.c.l.b16 %v46
    %v85 = vunpack.c.l.b16 %v47
    %v86 = vunpack.c.l.b16 %v48
    %v87 = vunpack.c.l.b16 %v49
    %v88 = vunpack.c.l.b16 %v50
    %v89 = vunpack.c.l.b16 %v51
    %v90 = vunpack.c.l.b16 %v52
    %v91 = vunpack.c.l.b16 %v53
    %v92 = vunpack.c.l.b16 %v54
    %v93 = vunpack.c.l.b16 %v55
    %v94 = vunpack.c.l.b16 %v56
    %v95 = vunpack.c.l.b16 %v57
    %v96 = vunpack.c.l.b16 %v58
    %v97 = vunpack.c.l.b16 %v59
    %v98 = vunpack.c.l.b16 %v60
    %v99 = vunpack.c.l.b16 %v61
    %v100 = vpack.c.b16 %v85, %v84
    %v101 = vpack.c.b16 %v87, %v86
    %v102 = vpack.c.b16 %v89, %v88
    %v103 = vpack.c.b16 %v91, %v90
    %v104 = vpack.c.b16 %v93, %v92
    %v105 = vpack.c.b16 %v95, %v94
    %v106 = vpack.c.b16 %v97, %v96
    %v107 = vpack.c.b16 %v99, %v98
    %116 = vmatprep.subr.bf16.mxu0 0
    %117 = vmatpush1.bf16.msra.mxu0 %v107
    %118 = vmatprep.subr.bf16.mxu0 0
    %119 = vmatpush1.bf16.msra.mxu0 %v106
    %120 = vmatprep.subr.bf16.mxu0 0
    %121 = vmatpush1.bf16.msra.mxu0 %v105
    %122 = vmatprep.subr.bf16.mxu0 0
    %123 = vmatpush1.bf16.msra.mxu0 %v104
    %124 = vmatprep.subr.bf16.mxu0 0
    %125 = vmatpush1.bf16.msra.mxu0 %v103
    %126 = vmatprep.subr.bf16.mxu0 0
    %127 = vmatpush1.bf16.msra.mxu0 %v102
    %128 = vmatprep.subr.bf16.mxu0 0
    %129 = vmatpush1.bf16.msra.mxu0 %v101
    %130 = vmatprep.subr.bf16.mxu0 0
    %131 = vmatpush1.bf16.msra.mxu0 %v100
    %132 = vmatprep.subr.bf16.mxu0 0
    %133 = vmatpush2.bf16.msra.mxu0 0
    %134 = vmatprep.subr.bf16.mxu0 0
    %135 = vmatpush2.bf16.msra.mxu0 0
    %136 = vmatprep.subr.bf16.mxu0 0
    %137 = vmatpush2.bf16.msra.mxu0 0
    %138 = vmatprep.subr.bf16.mxu0 0
    %139 = vmatpush2.bf16.msra.mxu0 0
    %140 = vmatprep.subr.bf16.mxu0 0
    %141 = vmatpush2.bf16.msra.mxu0 0
    %142 = vmatprep.subr.bf16.mxu0 0
    %143 = vmatpush2.bf16.msra.mxu0 0
    %144 = vmatprep.subr.bf16.mxu0 0
    %145 = vmatpush2.bf16.msra.mxu0 0
    %146 = vmatprep.subr.bf16.mxu0 0
    %147 = vmatpush2.bf16.msra.mxu0 0
    %148 = vmatprep.mubr.bf16.mxu0 0
    %149 = vmatmul.mubr.bf16.gmra.mxu0 %v66
    %v150 = vpop.f32.mrf.mxu0
    %v151 = vadd.f32 0.0, %v150
    %v152 = vpop.f32.mrf.mxu0
    %v153 = vpop.f32.mrf.mxu0
    %v154 = vadd.f32 0.0, %v153
    %v155 = vpop.f32.mrf.mxu0
    %156 = vdwg.mxu0
    %p157 = scmp.eq.s32.totalorder 0, 0
    // Predicated region
    $region22: #{tpu_custom_call.1} parent=1 // pred_check
      %p158 = pneg %p157
    $region23: #{tpu_custom_call.1} parent=1 // pred_check_branch
      %160 = sbr.rel (%p158) target = $region25
    $region24: #{tpu_custom_call.1} parent=1 // pred_region
      %161 = vst [vmem:[#allocation2] sm:$0xff] %v151
      %162 = vst [vmem:[#allocation2 + $0x8] sm:$0xff] %v154
    $region25: #{tpu_custom_call.1} parent=1 // pred_fallthru
      _
    %p163 = scmp.gt.s32.totalorder 0, 0
    // Predicated region
    $region26: #{tpu_custom_call.1} parent=1 // pred_check
      %p164 = pneg %p163
    $region27: #{tpu_custom_call.1} parent=1 // pred_check_branch
      %166 = sbr.rel (%p164) target = $region29
    $region28: #{tpu_custom_call.1} parent=1 // pred_region
      %v167 = vld [vmem:[#allocation2] sm:$0xff]
      %v168 = vld [vmem:[#allocation2 + $0x8] sm:$0xff]
      %v169 = vadd.f32 %v167, %v151
      %v170 = vadd.f32 %v168, %v154
      %171 = vst [vmem:[#allocation2] sm:$0xff] %v169
      %172 = vst [vmem:[#allocation2 + $0x8] sm:$0xff] %v170
    $region29: #{tpu_custom_call.1} parent=1 // pred_fallthru
      _
    // Predicated region
    $region30: #{tpu_custom_call.1} parent=1 // pred_check
      %p173 = pneg %p157
    $region31: #{tpu_custom_call.1} parent=1 // pred_check_branch
      %175 = sbr.rel (%p173) target = $region33
    $region32: #{tpu_custom_call.1} parent=1 // pred_region
      %v176 = vld [vmem:[#allocation2] sm:$0xff]
      %v177 = vld [vmem:[#allocation2 + $0x8] sm:$0xff]
      %v178 = vld [vmem:[%s2] sm:$0x1]
      %v180 = vlaneseq
      %v181 = vshrl.u32 %v180, 7
      %v182 = vsub.s32 0, %v181
      %v183 = vrot.slane %v178, %v182
      %v185 = vadd.f32 %v176, %v183
      %v186 = vadd.f32 %v177, %v183
      %187 = vst [vmem:[#allocation8] sm:$0xff] %v185
      %188 = vst [vmem:[#allocation8 + $0x8] sm:$0xff] %v186
    $region33: #{tpu_custom_call.1} parent=1 // pred_fallthru
      _
    // Predicated region
    $region34: #{tpu_custom_call.1} parent=1 // pred_check
      _
    $region35: #{tpu_custom_call.1} parent=1 // pred_check_branch
      %190 = sbr.rel (0) target = $region37
    $region36: #{tpu_custom_call.1} parent=1 // pred_region
      %s192 = ssub.s32 256, 256
      %193 = vsyncadd [#allocation5], %s192
      %s194 = sshll.u32 [#allocation8], 4
      %s195 = int_to_ptr.vmem [resolvable:$true] %s194
      %200 = dma.vmem_to_hbm [thread:$0]  %s195, 256, %s3, [#allocation5], 128, 128, 8
    $region37: #{tpu_custom_call.1} parent=1 // pred_fallthru
      _
    // Predicated region
    $region38: #{tpu_custom_call.1} parent=1 // pred_check
      _
    $region39: #{tpu_custom_call.1} parent=1 // pred_check_branch
      %202 = sbr.rel (0) target = $region41
    $region40: #{tpu_custom_call.1} parent=1 // pred_region
      %203 = dma.done [#allocation5], 256
    $region41: #{tpu_custom_call.1} parent=1 // pred_fallthru
      _
    %204 = vsyncpa [#allocation4], 1
    %205 = vsyncpa [#allocation7], 1
    %206 = vsyncpa [#allocation5], 1

</llo_original>
